<compile_context>
chip_gen: v6e
topology: v6e:2x2x1
jax: 0.10.0
libtpu: 0.0.40
codegen_flags: <defaults>
</compile_context>

<pallas_src>
import math

import jax
import jax.numpy as jnp
from jax.experimental import pallas as pl
from jax.experimental.pallas import tpu as pltpu

OUT_PAD = 128  # lane-dense padding of the fused final layer's output columns


# ---------------------------------------------------------------------------
# Fused kernel: whole MLP (all critics) for one batch-tile grid point
# ---------------------------------------------------------------------------
def _make_vcritic_kernel(n_layers, num_critics):
    """Kernel factory so arbitrary MLP depth unrolls at trace time."""

    def kernel(obs_ref, *refs):
        o_ref = refs[-1]                     # (num_critics, tile_b)
        h = obs_ref[...]                     # (tile_b, obs_dim), f32
        for layer in range(n_layers):
            w = refs[2 * layer][...]         # (in_l, out_l), critics fused
            b = refs[2 * layer + 1][...]     # (1, out_l) -> broadcasts over batch
            h = jnp.dot(h, w, preferred_element_type=jnp.float32) + b
            if layer < n_layers - 1:         # ReLU hidden, identity output
                h = jnp.maximum(h, 0.0)
        # h: (tile_b, OUT_PAD); column c holds critic c's value (cols >= C are 0).
        # Transpose so batch sits on the lane axis, keep only the C real rows
        # -> compact [C, B] HBM output instead of a 128x-padded slab.
        o_ref[...] = jnp.transpose(h)[:num_critics, :]

    return kernel


# ---------------------------------------------------------------------------
# Wrapper
# ---------------------------------------------------------------------------
def vcritic_forward(obs, params, *, tile_b=1024):
    """obs: [B, obs_dim] f32 -> list of num_critics arrays of shape [B]."""
    ws, bs = params["ws"], params["bs"]
    n_layers = len(ws)
    num_critics = params["num_critics"]
    B, obs_dim = obs.shape

    if B <= tile_b:
        tb = B                                   # single block: "== full dim" satisfies tiling rules
    else:
        tb = max(128, (tile_b // 128) * 128)     # multiple of 128 -> lane-dense output blocks
    grid = (pl.cdiv(B, tb),)                     # Pallas handles the partial last block (no pad copy)

    in_specs = [pl.BlockSpec((tb, obs_dim), lambda i: (i, 0))]
    flat_params = []
    for layer in range(n_layers):
        w, bvec = ws[layer], bs[layer]
        in_specs.append(pl.BlockSpec(w.shape, lambda i: (0, 0)))
        in_specs.append(pl.BlockSpec(bvec.shape, lambda i: (0, 0)))
        flat_params += [w, bvec]

    out = pl.pallas_call(
        _make_vcritic_kernel(n_layers, num_critics),
        out_shape=jax.ShapeDtypeStruct((num_critics, B), jnp.float32),
        grid=grid,
        in_specs=in_specs,
        out_specs=pl.BlockSpec((num_critics, tb), lambda i: (0, i)),
        compiler_params=pltpu.CompilerParams(
            dimension_semantics=("parallel",),
            vmem_limit_bytes=32 * 1024 * 1024,   # headroom if tile_b/obs_dim are raised
        ),
    )(obs, *flat_params)

    return [out[c] for c in range(num_critics)]


# ---------------------------------------------------------------------------
# Parameter init (matches nn.Linear + kaiming_uniform(a=sqrt(5)) => U(+-1/sqrt(fan_in)))
# and fusion of all critics into one block-diagonal MLP.
# ---------------------------------------------------------------------------
def _init_linear(key, fan_in, fan_out):
    kw, kb = jax.random.split(key)
    bound = 1.0 / math.sqrt(fan_in)
    w = jax.random.uniform(kw, (fan_in, fan_out), jnp.float32, -bound, bound)
    b = jax.random.uniform(kb, (1, fan_out), jnp.float32, -bound, bound)
    return w, b


def _block_diag(mats):
    n = len(mats)
    rows = []
    for i, m in enumerate(mats):
        row = [m if j == i else jnp.zeros((m.shape[0], mats[j].shape[1]), m.dtype)
               for j in range(n)]
        rows.append(jnp.concatenate(row, axis=1))
    return jnp.concatenate(rows, axis=0)


def init_vcritic_params(key, obs_dim, hidden_sizes, num_critics=1):
    assert num_critics <= OUT_PAD
    sizes = [obs_dim, *hidden_sizes, 1]
    n_layers = len(sizes) - 1
    ckeys = jax.random.split(key, num_critics)

    per_critic_ws, per_critic_bs = [], []
    for c in range(num_critics):
        lkeys = jax.random.split(ckeys[c], n_layers)
        ws_c, bs_c = [], []
        for l in range(n_layers):
            w, b = _init_linear(lkeys[l], sizes[l], sizes[l + 1])
            ws_c.append(w)
            bs_c.append(b)
        per_critic_ws.append(ws_c)
        per_critic_bs.append(bs_c)

    # Fuse across critics: layer 0 concatenated on the output axis, deeper layers
    # block-diagonal, biases concatenated. ws[l]: [in_l_fused, out_l_fused].
    fused_ws, fused_bs = [], []
    for l in range(n_layers):
        if l == 0:
            W = jnp.concatenate([per_critic_ws[c][0] for c in range(num_critics)], axis=1)
        else:
            W = _block_diag([per_critic_ws[c][l] for c in range(num_critics)])
        b = jnp.concatenate([per_critic_bs[c][l] for c in range(num_critics)], axis=1)
        fused_ws.append(W)
        fused_bs.append(b)

    # Lane-dense padding of the final (per-critic scalar output) layer: the extra
    # columns are zero, so cols 0..C-1 of the final activation hold the true values.
    last_cols = fused_ws[-1].shape[1]            # == num_critics
    pad = OUT_PAD - last_cols
    fused_ws[-1] = jnp.pad(fused_ws[-1], ((0, 0), (0, pad)))
    fused_bs[-1] = jnp.pad(fused_bs[-1], ((0, 0), (0, pad)))

    return {
        "ws": fused_ws,
        "bs": fused_bs,
        "num_critics": num_critics,
        # un-fused copies kept only for the pure-JAX reference check
        "per_critic_ws": per_critic_ws,
        "per_critic_bs": per_critic_bs,
    }


# ---------------------------------------------------------------------------
# Pure-JAX reference (per-critic, un-fused — mirrors the PyTorch module)
# ---------------------------------------------------------------------------
def vcritic_reference(obs, params):
    outs = []
    for c in range(params["num_critics"]):
        h = obs
        ws_c = params["per_critic_ws"][c]
        bs_c = params["per_critic_bs"][c]
        for l in range(len(ws_c)):
            h = jnp.dot(h, ws_c[l], precision=jax.lax.Precision.HIGHEST) + bs_c[l]
            if l < len(ws_c) - 1:
                h = jnp.maximum(h, 0.0)
        outs.append(h[:, 0])
    return outs


# ---------------------------------------------------------------------------
if __name__ == "__main__":
    obs_dim = 16
    hidden_sizes = [32, 32]
    num_critics = 2

    root = jax.random.PRNGKey(0)
    k_params, k_obs1, k_obs2 = jax.random.split(root, 3)
    params = init_vcritic_params(k_params, obs_dim, hidden_sizes, num_critics)

    def check(obs, tile_b):
        outs = vcritic_forward(obs, params, tile_b=tile_b)
        outs = jax.block_until_ready(outs)
        refs = vcritic_reference(obs, params)
        assert len(outs) == num_critics
        for o, r in zip(outs, refs):
            assert o.shape == (obs.shape[0],), o.shape
            assert o.dtype == jnp.float32
            assert bool(jnp.all(jnp.isfinite(o)))
            assert bool(jnp.allclose(o, r, rtol=1e-3, atol=1e-3)), (o, r)

    # Small single-block case (batch == tile).
    obs_small = jax.random.normal(k_obs1, (8, obs_dim), dtype=jnp.float32)
    check(obs_small, tile_b=1024)

    # Multi-tile case with a partial last block (no jnp.pad; Pallas clips it).
    obs_large = jax.random.normal(k_obs2, (200, obs_dim), dtype=jnp.float32)
    check(obs_large, tile_b=128)

    print("KERNEL_OK")
</pallas_src>

<mosaic_0001>
module attributes {stable_mosaic.version = 11 : i64} {
  func.func @kernel(%arg0: i32, %arg1: memref<8x16xf32, #tpu.memory_space<vmem>>, %arg2: memref<16x64xf32, #tpu.memory_space<vmem>>, %arg3: memref<1x64xf32, #tpu.memory_space<vmem>>, %arg4: memref<64x64xf32, #tpu.memory_space<vmem>>, %arg5: memref<1x64xf32, #tpu.memory_space<vmem>>, %arg6: memref<64x128xf32, #tpu.memory_space<vmem>>, %arg7: memref<1x128xf32, #tpu.memory_space<vmem>>, %arg8: memref<2x8xf32, #tpu.memory_space<vmem>>) attributes {dimension_semantics = [#tpu.dimension_semantics<parallel>], iteration_bounds = array<i64: 1>, scalar_prefetch = 0 : i64, scratch_operands = 0 : i64, tpu.core_type = #tpu.core_type<tc>, window_params = [{transform_indices = @transform_0, window_bounds = array<i64: 8, 16>}, {pipeline_mode = #tpu.pipeline_mode<synchronous>, transform_indices = @transform_1, window_bounds = array<i64: 16, 64>}, {pipeline_mode = #tpu.pipeline_mode<synchronous>, transform_indices = @transform_2, window_bounds = array<i64: 1, 64>}, {pipeline_mode = #tpu.pipeline_mode<synchronous>, transform_indices = @transform_3, window_bounds = array<i64: 64, 64>}, {pipeline_mode = #tpu.pipeline_mode<synchronous>, transform_indices = @transform_4, window_bounds = array<i64: 1, 64>}, {pipeline_mode = #tpu.pipeline_mode<synchronous>, transform_indices = @transform_5, window_bounds = array<i64: 64, 128>}, {pipeline_mode = #tpu.pipeline_mode<synchronous>, transform_indices = @transform_6, window_bounds = array<i64: 1, 128>}, {transform_indices = @transform_7, window_bounds = array<i64: 2, 8>}]} {
    %c0 = arith.constant 0 : index
    %c0_0 = arith.constant 0 : index
    %0 = vector.load %arg1[%c0, %c0_0] : memref<8x16xf32, #tpu.memory_space<vmem>>, vector<8x16xf32>
    %c0_1 = arith.constant 0 : index
    %c0_2 = arith.constant 0 : index
    %1 = vector.load %arg2[%c0_1, %c0_2] : memref<16x64xf32, #tpu.memory_space<vmem>>, vector<16x64xf32>
    %c0_3 = arith.constant 0 : index
    %c0_4 = arith.constant 0 : index
    %2 = vector.load %arg3[%c0_3, %c0_4] : memref<1x64xf32, #tpu.memory_space<vmem>>, vector<1x64xf32>
    %cst = arith.constant dense<0.000000e+00> : vector<8x64xf32>
    %3 = tpu.matmul %0, %1, %cst {dimension_numbers = #tpu.dot_dimension_numbers<[1], [0], [0], [1], [0, 0, 1, 1], [], []>} : vector<8x16xf32>, vector<16x64xf32>, vector<8x64xf32> -> vector<8x64xf32>
    %4 = vector.broadcast %2 : vector<1x64xf32> to vector<8x64xf32>
    %5 = arith.addf %3, %4 : vector<8x64xf32>
    %cst_5 = arith.constant 0.000000e+00 : f32
    %6 = vector.broadcast %cst_5 : f32 to vector<8x64xf32>
    %7 = arith.maximumf %5, %6 : vector<8x64xf32>
    %c0_6 = arith.constant 0 : index
    %c0_7 = arith.constant 0 : index
    %8 = vector.load %arg4[%c0_6, %c0_7] : memref<64x64xf32, #tpu.memory_space<vmem>>, vector<64x64xf32>
    %c0_8 = arith.constant 0 : index
    %c0_9 = arith.constant 0 : index
    %9 = vector.load %arg5[%c0_8, %c0_9] : memref<1x64xf32, #tpu.memory_space<vmem>>, vector<1x64xf32>
    %cst_10 = arith.constant dense<0.000000e+00> : vector<8x64xf32>
    %10 = tpu.matmul %7, %8, %cst_10 {dimension_numbers = #tpu.dot_dimension_numbers<[1], [0], [0], [1], [0, 0, 1, 1], [], []>} : vector<8x64xf32>, vector<64x64xf32>, vector<8x64xf32> -> vector<8x64xf32>
    %11 = vector.broadcast %9 : vector<1x64xf32> to vector<8x64xf32>
    %12 = arith.addf %10, %11 : vector<8x64xf32>
    %cst_11 = arith.constant 0.000000e+00 : f32
    %13 = vector.broadcast %cst_11 : f32 to vector<8x64xf32>
    %14 = arith.maximumf %12, %13 : vector<8x64xf32>
    %c0_12 = arith.constant 0 : index
    %c0_13 = arith.constant 0 : index
    %15 = vector.load %arg6[%c0_12, %c0_13] : memref<64x128xf32, #tpu.memory_space<vmem>>, vector<64x128xf32>
    %c0_14 = arith.constant 0 : index
    %c0_15 = arith.constant 0 : index
    %16 = vector.load %arg7[%c0_14, %c0_15] : memref<1x128xf32, #tpu.memory_space<vmem>>, vector<1x128xf32>
    %cst_16 = arith.constant dense<0.000000e+00> : vector<8x128xf32>
    %17 = tpu.matmul %14, %15, %cst_16 {dimension_numbers = #tpu.dot_dimension_numbers<[1], [0], [0], [1], [0, 0, 1, 1], [], []>} : vector<8x64xf32>, vector<64x128xf32>, vector<8x128xf32> -> vector<8x128xf32>
    %18 = vector.broadcast %16 : vector<1x128xf32> to vector<8x128xf32>
    %19 = arith.addf %17, %18 : vector<8x128xf32>
    %20 = tpu.transpose %19, [1, 0] : vector<8x128xf32> -> vector<128x8xf32>
    %21 = vector.extract_strided_slice %20 {offsets = [0, 0], sizes = [2, 8], strides = [1, 1]} : vector<128x8xf32> to vector<2x8xf32>
    %c0_17 = arith.constant 0 : index
    %c0_18 = arith.constant 0 : index
    %22 = vector.load %arg8[%c0_17, %c0_18] : memref<2x8xf32, #tpu.memory_space<vmem>>, vector<2x8xf32>
    tpu.vector_store %arg8[%c0_17, %c0_18], %21 {strides = array<i32>} : memref<2x8xf32, #tpu.memory_space<vmem>>, vector<2x8xf32>,
    return
  }
  func.func @transform_0(%arg0: i32) -> (i32, i32) {
    %c0_i32 = arith.constant 0 : i32
    %c0_i32_0 = arith.constant 0 : i32
    return %arg0, %c0_i32 : i32, i32
  }
  func.func @transform_1(%arg0: i32) -> (i32, i32) {
    %c0_i32 = arith.constant 0 : i32
    %c0_i32_0 = arith.constant 0 : i32
    %c0_i32_1 = arith.constant 0 : i32
    return %c0_i32, %c0_i32_0 : i32, i32
  }
  func.func @transform_2(%arg0: i32) -> (i32, i32) {
    %c0_i32 = arith.constant 0 : i32
    %c0_i32_0 = arith.constant 0 : i32
    %c0_i32_1 = arith.constant 0 : i32
    return %c0_i32, %c0_i32_0 : i32, i32
  }
  func.func @transform_3(%arg0: i32) -> (i32, i32) {
    %c0_i32 = arith.constant 0 : i32
    %c0_i32_0 = arith.constant 0 : i32
    %c0_i32_1 = arith.constant 0 : i32
    return %c0_i32, %c0_i32_0 : i32, i32
  }
  func.func @transform_4(%arg0: i32) -> (i32, i32) {
    %c0_i32 = arith.constant 0 : i32
    %c0_i32_0 = arith.constant 0 : i32
    %c0_i32_1 = arith.constant 0 : i32
    return %c0_i32, %c0_i32_0 : i32, i32
  }
  func.func @transform_5(%arg0: i32) -> (i32, i32) {
    %c0_i32 = arith.constant 0 : i32
    %c0_i32_0 = arith.constant 0 : i32
    %c0_i32_1 = arith.constant 0 : i32
    return %c0_i32, %c0_i32_0 : i32, i32
  }
  func.func @transform_6(%arg0: i32) -> (i32, i32) {
    %c0_i32 = arith.constant 0 : i32
    %c0_i32_0 = arith.constant 0 : i32
    %c0_i32_1 = arith.constant 0 : i32
    return %c0_i32, %c0_i32_0 : i32, i32
  }
  func.func @transform_7(%arg0: i32) -> (i32, i32) {
    %c0_i32 = arith.constant 0 : i32
    %c0_i32_0 = arith.constant 0 : i32
    return %c0_i32, %arg0 : i32, i32
  }
}

</mosaic_0001>

<llo_original>
// kernel: tpu_custom_call.1
$region0: #{tpu_custom_call.1}
  #allocation0 [shape = 'u32[]', space=smem, size = 0x4, offset = 0x4, fixed_abs, tag = 'smem constant byte address 0x4 - core index']
  #allocation1 [shape = 'u32[144,128]{1,0:T(1,128)}', space=vmem, size = 0x12000, scoped, tag = 'internal scratch']
  %s0 = inlined_call_operand.hbm [shape: f32[8,16], index: 0, kind: input, shape index: {}]
  %s1 = inlined_call_operand.hbm [shape: f32[16,64], index: 1, kind: input, shape index: {}]
  %s2 = inlined_call_operand.vmem [shape: f32[1,64], index: 2, kind: input, shape index: {}]
  %s3 = inlined_call_operand.hbm [shape: f32[64,64], index: 3, kind: input, shape index: {}]
  %s4 = inlined_call_operand.vmem [shape: f32[1,64], index: 4, kind: input, shape index: {}]
  %s5 = inlined_call_operand.hbm [shape: f32[64,128], index: 5, kind: input, shape index: {}]
  %s6 = inlined_call_operand.vmem [shape: f32[1,128], index: 6, kind: input, shape index: {}]
  %s7 = inlined_call_operand.hbm [shape: f32[2,8], index: 7, kind: output, shape index: {}]
  %s8 = sld [smem:[#allocation0]]
  $region54: #{tpu_custom_call.1} parent=0
    _
  %s10 = ssub.s32 1, %s8
  %s11 = scalar_select 0, %s10, %s8
  $region1: #{tpu_custom_call.1} parent=0
    #allocation2 [shape = 'u8[4096]{0}', space=vmem, size = 0x1000, scoped, tag = 'input window, operand 0, single buffered']
    #allocation3 [shape = 's32[1]{0}', space=sflag, size = 0x4, scoped, tag = 'scoped memory for tpu_custom_call.1']
    #allocation4 [shape = 's32[1]{0}', space=sflag, size = 0x4, scoped, tag = 'scoped memory for tpu_custom_call.1']
    #allocation5 [shape = 'u8[8192]{0}', space=vmem, size = 0x2000, scoped, tag = 'input window, operand 1, single buffered']
    #allocation6 [shape = 's32[1]{0}', space=sflag, size = 0x4, scoped, tag = 'scoped memory for tpu_custom_call.1']
    #allocation7 [shape = 'u8[32768]{0}', space=vmem, size = 0x8000, scoped, tag = 'input window, operand 3, single buffered']
    #allocation8 [shape = 'u8[32768]{0}', space=vmem, size = 0x8000, scoped, tag = 'input window, operand 5, single buffered']
    #allocation9 [shape = 's32[1]{0}', space=sflag, size = 0x4, scoped, tag = 'scoped memory for tpu_custom_call.1']
    #allocation10 [shape = 'u8[1024]{0}', space=vmem, size = 0x400, scoped, tag = 'output window, operand 0, single buffered']
    %12 = vsyncpa [#allocation3], 0
    %13 = vsyncpa [#allocation6], 0
    %14 = vsyncpa [#allocation9], 0
    %15 = vsyncpa [#allocation4], 0
    // Predicated region
    $region2: #{tpu_custom_call.1} parent=1 // pred_check
      _
    $region3: #{tpu_custom_call.1} parent=1 // pred_check_branch
      %17 = sbr.rel (0) target = $region5
    $region4: #{tpu_custom_call.1} parent=1 // pred_region
      %s19 = ssub.s32 128, 128
      %20 = vsyncadd [#allocation3], %s19
      %s22 = sshll.u32 [#allocation2], 4
      %s23 = int_to_ptr.vmem [resolvable:$true] %s22
      %25 = dma.hbm_to_vmem [thread:$0]  %s0, 128, %s23, [#allocation3]
    $region5: #{tpu_custom_call.1} parent=1 // pred_fallthru
      _
    // Predicated region
    $region6: #{tpu_custom_call.1} parent=1 // pred_check
      _
    $region7: #{tpu_custom_call.1} parent=1 // pred_check_branch
      %27 = sbr.rel (0) target = $region9
    $region8: #{tpu_custom_call.1} parent=1 // pred_region
      %s29 = ssub.s32 256, 256
      %30 = vsyncadd [#allocation6], %s29
      %s31 = sshll.u32 [#allocation5], 4
      %s32 = int_to_ptr.vmem [resolvable:$true] %s31
      %37 = dma.hbm_to_vmem [thread:$0]  %s1, 256, %s32, [#allocation6], 128, 128, 8
    $region9: #{tpu_custom_call.1} parent=1 // pred_fallthru
      _
    // Predicated region
    $region10: #{tpu_custom_call.1} parent=1 // pred_check
      _
    $region11: #{tpu_custom_call.1} parent=1 // pred_check_branch
      %39 = sbr.rel (0) target = $region13
    $region12: #{tpu_custom_call.1} parent=1 // pred_region
      _
    $region13: #{tpu_custom_call.1} parent=1 // pred_fallthru
      _
    // Predicated region
    $region14: #{tpu_custom_call.1} parent=1 // pred_check
      _
    $region15: #{tpu_custom_call.1} parent=1 // pred_check_branch
      %41 = sbr.rel (0) target = $region17
    $region16: #{tpu_custom_call.1} parent=1 // pred_region
      %s43 = ssub.s32 1024, 1024
      %44 = vsyncadd [#allocation6], %s43
      %s45 = sshll.u32 [#allocation7], 4
      %s46 = int_to_ptr.vmem [resolvable:$true] %s45
      %51 = dma.hbm_to_vmem [thread:$0]  %s3, 1024, %s46, [#allocation6], 128, 128, 8
    $region17: #{tpu_custom_call.1} parent=1 // pred_fallthru
      _
    // Predicated region
    $region18: #{tpu_custom_call.1} parent=1 // pred_check
      _
    $region19: #{tpu_custom_call.1} parent=1 // pred_check_branch
      %53 = sbr.rel (0) target = $region21
    $region20: #{tpu_custom_call.1} parent=1 // pred_region
      _
    $region21: #{tpu_custom_call.1} parent=1 // pred_fallthru
      _
    // Predicated region
    $region22: #{tpu_custom_call.1} parent=1 // pred_check
      _
    $region23: #{tpu_custom_call.1} parent=1 // pred_check_branch
      %55 = sbr.rel (0) target = $region25
    $region24: #{tpu_custom_call.1} parent=1 // pred_region
      %s57 = ssub.s32 1024, 1024
      %58 = vsyncadd [#allocation9], %s57
      %s59 = sshll.u32 [#allocation8], 4
      %s60 = int_to_ptr.vmem [resolvable:$true] %s59
      %65 = dma.hbm_to_vmem [thread:$0]  %s5, 1024, %s60, [#allocation9], 128, 128, 8
    $region25: #{tpu_custom_call.1} parent=1 // pred_fallthru
      _
    // Predicated region
    $region26: #{tpu_custom_call.1} parent=1 // pred_check
      _
    $region27: #{tpu_custom_call.1} parent=1 // pred_check_branch
      %67 = sbr.rel (0) target = $region29
    $region28: #{tpu_custom_call.1} parent=1 // pred_region
      _
    $region29: #{tpu_custom_call.1} parent=1 // pred_fallthru
      _
    // Predicated region
    $region30: #{tpu_custom_call.1} parent=1 // pred_check
      _
    $region31: #{tpu_custom_call.1} parent=1 // pred_check_branch
      %69 = sbr.rel (0) target = $region33
    $region32: #{tpu_custom_call.1} parent=1 // pred_region
      %70 = dma.done [#allocation3], 128
    $region33: #{tpu_custom_call.1} parent=1 // pred_fallthru
      _
    // Predicated region
    $region34: #{tpu_custom_call.1} parent=1 // pred_check
      _
    $region35: #{tpu_custom_call.1} parent=1 // pred_check_branch
      %72 = sbr.rel (0) target = $region37
    $region36: #{tpu_custom_call.1} parent=1 // pred_region
      %73 = dma.done [#allocation6], 256
    $region37: #{tpu_custom_call.1} parent=1 // pred_fallthru
      _
    // Predicated region
    $region38: #{tpu_custom_call.1} parent=1 // pred_check
      _
    $region39: #{tpu_custom_call.1} parent=1 // pred_check_branch
      %75 = sbr.rel (0) target = $region41
    $region40: #{tpu_custom_call.1} parent=1 // pred_region
      %76 = dma.done [#allocation6], 1024
    $region41: #{tpu_custom_call.1} parent=1 // pred_fallthru
      _
    // Predicated region
    $region42: #{tpu_custom_call.1} parent=1 // pred_check
      _
    $region43: #{tpu_custom_call.1} parent=1 // pred_check_branch
      %78 = sbr.rel (0) target = $region45
    $region44: #{tpu_custom_call.1} parent=1 // pred_region
      %79 = dma.done [#allocation9], 1024
    $region45: #{tpu_custom_call.1} parent=1 // pred_fallthru
      _
    %v80 = vld [vmem:[#allocation2] sm:$0xff]
    %v81 = vld [vmem:[#allocation5] sm:$0xff]
    %v82 = vld [vmem:[#allocation5 + $0x8] sm:$0xff]
    %v83 = vld [vmem:[%s2] sm:$0x1]
    %v85 = vlaneseq
    %v86 = vshrl.u32 %v85, 7
    %v87 = vsub.s32 0, %v86
    %v88 = vrot.slane %v83, %v87
    %vm90 = vcmask 130048
    %v92 = vsel %vm90, %v80, 0
    %94 = vmatprep.subr.mxu0 0.0
    %95 = vmatpush1.msra.mxu0 0.0
    %96 = vmatprep.subr.mxu0 0.0
    %97 = vmatpush1.msra.mxu0 0.0
    %98 = vmatprep.subr.mxu0 0.0
    %99 = vmatpush1.msra.mxu0 0.0
    %100 = vmatprep.subr.mxu0 0.0
    %101 = vmatpush1.msra.mxu0 0.0
    %102 = vmatprep.subr.mxu0 0.0
    %103 = vmatpush1.msra.mxu0 0.0
    %104 = vmatprep.subr.mxu0 0.0
    %105 = vmatpush1.msra.mxu0 0.0
    %106 = vmatprep.subr.mxu0 0.0
    %107 = vmatpush1.msra.mxu0 0.0
    %108 = vmatprep.subr.mxu0 0.0
    %109 = vmatpush1.msra.mxu0 0.0
    %110 = vmatprep.subr.mxu0 0.0
    %111 = vmatpush1.msra.mxu0 0.0
    %112 = vmatprep.subr.mxu0 0.0
    %113 = vmatpush1.msra.mxu0 0.0
    %114 = vmatprep.subr.mxu0 0.0
    %115 = vmatpush1.msra.mxu0 0.0
    %116 = vmatprep.subr.mxu0 0.0
    %117 = vmatpush1.msra.mxu0 0.0
    %118 = vmatprep.subr.mxu0 0.0
    %119 = vmatpush1.msra.mxu0 0.0
    %120 = vmatprep.subr.mxu0 0.0
    %121 = vmatpush1.msra.mxu0 0.0
    %122 = vmatprep.subr.mxu0 0.0
    %123 = vmatpush1.msra.mxu0 %v82
    %124 = vmatprep.subr.mxu0 0.0
    %125 = vmatpush1.msra.mxu0 %v81
    %126 = vmatprep.subr.mxu0 0.0
    %127 = vmatpush2.msra.mxu0 0.0
    %128 = vmatprep.subr.mxu0 0.0
    %129 = vmatpush2.msra.mxu0 0.0
    %130 = vmatprep.subr.mxu0 0.0
    %131 = vmatpush2.msra.mxu0 0.0
    %132 = vmatprep.subr.mxu0 0.0
    %133 = vmatpush2.msra.mxu0 0.0
    %134 = vmatprep.subr.mxu0 0.0
    %135 = vmatpush2.msra.mxu0 0.0
    %136 = vmatprep.subr.mxu0 0.0
    %137 = vmatpush2.msra.mxu0 0.0
    %138 = vmatprep.subr.mxu0 0.0
    %139 = vmatpush2.msra.mxu0 0.0
    %140 = vmatprep.subr.mxu0 0.0
    %141 = vmatpush2.msra.mxu0 0.0
    %142 = vmatprep.subr.mxu0 0.0
    %143 = vmatpush2.msra.mxu0 0.0
    %144 = vmatprep.subr.mxu0 0.0
    %145 = vmatpush2.msra.mxu0 0.0
    %146 = vmatprep.subr.mxu0 0.0
    %147 = vmatpush2.msra.mxu0 0.0
    %148 = vmatprep.subr.mxu0 0.0
    %149 = vmatpush2.msra.mxu0 0.0
    %150 = vmatprep.subr.mxu0 0.0
    %151 = vmatpush2.msra.mxu0 0.0
    %152 = vmatprep.subr.mxu0 0.0
    %153 = vmatpush2.msra.mxu0 0.0
    %154 = vmatprep.subr.mxu0 0.0
    %155 = vmatpush2.msra.mxu0 0.0
    %156 = vmatprep.subr.mxu0 0.0
    %157 = vmatpush2.msra.mxu0 0.0
    %158 = vmatprep.mubr.f32.mxu0 0.0
    %159 = vmatmul.mubr.f32.gmra.mxu0 %v92
    %v160 = vpop.f32.mrf.mxu0
    %v161 = vadd.f32 %v88, %v160
    %v162 = vpop.f32.mrf.mxu0
    %163 = vdwg.mxu0
    %v164 = vmax.f32 %v161, 0.0
    %v165 = vld [vmem:[#allocation7] sm:$0xff]
    %v166 = vld [vmem:[#allocation7 + $0x8] sm:$0xff]
    %v167 = vld [vmem:[#allocation7 + $0x10] sm:$0xff]
    %v168 = vld [vmem:[#allocation7 + $0x18] sm:$0xff]
    %v169 = vld [vmem:[#allocation7 + $0x20] sm:$0xff]
    %v170 = vld [vmem:[#allocation7 + $0x28] sm:$0xff]
    %v171 = vld [vmem:[#allocation7 + $0x30] sm:$0xff]
    %v172 = vld [vmem:[#allocation7 + $0x38] sm:$0xff]
    %v173 = vld [vmem:[%s4] sm:$0x1]
    %v175 = vlaneseq
    %v176 = vshrl.u32 %v175, 7
    %v177 = vsub.s32 0, %v176
    %v178 = vrot.slane %v173, %v177
    %vm180 = vcmask 523264
    %v182 = vsel %vm180, %v164, 0
    %184 = vmatprep.subr.mxu0 0.0
    %185 = vmatpush1.msra.mxu0 0.0
    %186 = vmatprep.subr.mxu0 0.0
    %187 = vmatpush1.msra.mxu0 0.0
    %188 = vmatprep.subr.mxu0 0.0
    %189 = vmatpush1.msra.mxu0 0.0
    %190 = vmatprep.subr.mxu0 0.0
    %191 = vmatpush1.msra.mxu0 0.0
    %192 = vmatprep.subr.mxu0 0.0
    %193 = vmatpush1.msra.mxu0 0.0
    %194 = vmatprep.subr.mxu0 0.0
    %195 = vmatpush1.msra.mxu0 0.0
    %196 = vmatprep.subr.mxu0 0.0
    %197 = vmatpush1.msra.mxu0 0.0
    %198 = vmatprep.subr.mxu0 0.0
    %199 = vmatpush1.msra.mxu0 0.0
    %200 = vmatprep.subr.mxu0 0.0
    %201 = vmatpush1.msra.mxu0 %v172
    %202 = vmatprep.subr.mxu0 0.0
    %203 = vmatpush1.msra.mxu0 %v171
    %204 = vmatprep.subr.mxu0 0.0
    %205 = vmatpush1.msra.mxu0 %v170
    %206 = vmatprep.subr.mxu0 0.0
    %207 = vmatpush1.msra.mxu0 %v169
    %208 = vmatprep.subr.mxu0 0.0
    %209 = vmatpush1.msra.mxu0 %v168
    %210 = vmatprep.subr.mxu0 0.0
    %211 = vmatpush1.msra.mxu0 %v167
    %212 = vmatprep.subr.mxu0 0.0
    %213 = vmatpush1.msra.mxu0 %v166
    %214 = vmatprep.subr.mxu0 0.0
    %215 = vmatpush1.msra.mxu0 %v165
    %216 = vmatprep.subr.mxu0 0.0
    %217 = vmatpush2.msra.mxu0 0.0
    %218 = vmatprep.subr.mxu0 0.0
    %219 = vmatpush2.msra.mxu0 0.0
    %220 = vmatprep.subr.mxu0 0.0
    %221 = vmatpush2.msra.mxu0 0.0
    %222 = vmatprep.subr.mxu0 0.0
    %223 = vmatpush2.msra.mxu0 0.0
    %224 = vmatprep.subr.mxu0 0.0
    %225 = vmatpush2.msra.mxu0 0.0
    %226 = vmatprep.subr.mxu0 0.0
    %227 = vmatpush2.msra.mxu0 0.0
    %228 = vmatprep.subr.mxu0 0.0
    %229 = vmatpush2.msra.mxu0 0.0
    %230 = vmatprep.subr.mxu0 0.0
    %231 = vmatpush2.msra.mxu0 0.0
    %232 = vmatprep.subr.mxu0 0.0
    %233 = vmatpush2.msra.mxu0 0.0
    %234 = vmatprep.subr.mxu0 0.0
    %235 = vmatpush2.msra.mxu0 0.0
    %236 = vmatprep.subr.mxu0 0.0
    %237 = vmatpush2.msra.mxu0 0.0
    %238 = vmatprep.subr.mxu0 0.0
    %239 = vmatpush2.msra.mxu0 0.0
    %240 = vmatprep.subr.mxu0 0.0
    %241 = vmatpush2.msra.mxu0 0.0
    %242 = vmatprep.subr.mxu0 0.0
    %243 = vmatpush2.msra.mxu0 0.0
    %244 = vmatprep.subr.mxu0 0.0
    %245 = vmatpush2.msra.mxu0 0.0
    %246 = vmatprep.subr.mxu0 0.0
    %247 = vmatpush2.msra.mxu0 0.0
    %248 = vmatprep.mubr.f32.mxu0 0.0
    %249 = vmatmul.mubr.f32.gmra.mxu0 %v182
    %v250 = vpop.f32.mrf.mxu0
    %v251 = vadd.f32 %v178, %v250
    %v252 = vpop.f32.mrf.mxu0
    %253 = vdwg.mxu0
    %v254 = vmax.f32 %v251, 0.0
    %v255 = vld [vmem:[#allocation8] sm:$0xff]
    %v256 = vld [vmem:[#allocation8 + $0x8] sm:$0xff]
    %v257 = vld [vmem:[#allocation8 + $0x10] sm:$0xff]
    %v258 = vld [vmem:[#allocation8 + $0x18] sm:$0xff]
    %v259 = vld [vmem:[#allocation8 + $0x20] sm:$0xff]
    %v260 = vld [vmem:[#allocation8 + $0x28] sm:$0xff]
    %v261 = vld [vmem:[#allocation8 + $0x30] sm:$0xff]
    %v262 = vld [vmem:[#allocation8 + $0x38] sm:$0xff]
    %v263 = vld [vmem:[%s6] sm:$0x1]
    %v265 = vlaneseq
    %v266 = vshrl.u32 %v265, 7
    %v267 = vsub.s32 0, %v266
    %v268 = vrot.slane %v263, %v267
    %v271 = vsel %vm180, %v254, 0
    %273 = vmatprep.subr.mxu0 0.0
    %274 = vmatpush1.msra.mxu0 0.0
    %275 = vmatprep.subr.mxu0 0.0
    %276 = vmatpush1.msra.mxu0 0.0
    %277 = vmatprep.subr.mxu0 0.0
    %278 = vmatpush1.msra.mxu0 0.0
    %279 = vmatprep.subr.mxu0 0.0
    %280 = vmatpush1.msra.mxu0 0.0
    %281 = vmatprep.subr.mxu0 0.0
    %282 = vmatpush1.msra.mxu0 0.0
    %283 = vmatprep.subr.mxu0 0.0
    %284 = vmatpush1.msra.mxu0 0.0
    %285 = vmatprep.subr.mxu0 0.0
    %286 = vmatpush1.msra.mxu0 0.0
    %287 = vmatprep.subr.mxu0 0.0
    %288 = vmatpush1.msra.mxu0 0.0
    %289 = vmatprep.subr.mxu0 0.0
    %290 = vmatpush1.msra.mxu0 %v262
    %291 = vmatprep.subr.mxu0 0.0
    %292 = vmatpush1.msra.mxu0 %v261
    %293 = vmatprep.subr.mxu0 0.0
    %294 = vmatpush1.msra.mxu0 %v260
    %295 = vmatprep.subr.mxu0 0.0
    %296 = vmatpush1.msra.mxu0 %v259
    %297 = vmatprep.subr.mxu0 0.0
    %298 = vmatpush1.msra.mxu0 %v258
    %299 = vmatprep.subr.mxu0 0.0
    %300 = vmatpush1.msra.mxu0 %v257
    %301 = vmatprep.subr.mxu0 0.0
    %302 = vmatpush1.msra.mxu0 %v256
    %303 = vmatprep.subr.mxu0 0.0
    %304 = vmatpush1.msra.mxu0 %v255
    %305 = vmatprep.subr.mxu0 0.0
    %306 = vmatpush2.msra.mxu0 0.0
    %307 = vmatprep.subr.mxu0 0.0
    %308 = vmatpush2.msra.mxu0 0.0
    %309 = vmatprep.subr.mxu0 0.0
    %310 = vmatpush2.msra.mxu0 0.0
    %311 = vmatprep.subr.mxu0 0.0
    %312 = vmatpush2.msra.mxu0 0.0
    %313 = vmatprep.subr.mxu0 0.0
    %314 = vmatpush2.msra.mxu0 0.0
    %315 = vmatprep.subr.mxu0 0.0
    %316 = vmatpush2.msra.mxu0 0.0
    %317 = vmatprep.subr.mxu0 0.0
    %318 = vmatpush2.msra.mxu0 0.0
    %319 = vmatprep.subr.mxu0 0.0
    %320 = vmatpush2.msra.mxu0 0.0
    %321 = vmatprep.subr.mxu0 0.0
    %322 = vmatpush2.msra.mxu0 0.0
    %323 = vmatprep.subr.mxu0 0.0
    %324 = vmatpush2.msra.mxu0 0.0
    %325 = vmatprep.subr.mxu0 0.0
    %326 = vmatpush2.msra.mxu0 0.0
    %327 = vmatprep.subr.mxu0 0.0
    %328 = vmatpush2.msra.mxu0 0.0
    %329 = vmatprep.subr.mxu0 0.0
    %330 = vmatpush2.msra.mxu0 0.0
    %331 = vmatprep.subr.mxu0 0.0
    %332 = vmatpush2.msra.mxu0 0.0
    %333 = vmatprep.subr.mxu0 0.0
    %334 = vmatpush2.msra.mxu0 0.0
    %335 = vmatprep.subr.mxu0 0.0
    %336 = vmatpush2.msra.mxu0 0.0
    %337 = vmatprep.mubr.f32.mxu0 0.0
    %338 = vmatmul.mubr.f32.gmra.mxu0 %v271
    %v339 = vpop.f32.mrf.mxu0
    %v340 = vadd.f32 %v268, %v339
    %v341 = vpop.f32.mrf.mxu0
    %342 = vdwg.mxu0
    %343 = vxpose.xlu0.b32.start [1/16] %v340, 128
    %344 = vxpose.xlu0.b32.cont [2/16] 0.0, 128
    %345 = vxpose.xlu0.b32.cont [3/16] 0.0, 128
    %346 = vxpose.xlu0.b32.cont [4/16] 0.0, 128
    %347 = vxpose.xlu0.b32.cont [5/16] 0.0, 128
    %348 = vxpose.xlu0.b32.cont [6/16] 0.0, 128
    %349 = vxpose.xlu0.b32.cont [7/16] 0.0, 128
    %350 = vxpose.xlu0.b32.cont [8/16] 0.0, 128
    %351 = vxpose.xlu0.b32.cont [9/16] 0.0, 128
    %352 = vxpose.xlu0.b32.cont [10/16] 0.0, 128
    %353 = vxpose.xlu0.b32.cont [11/16] 0.0, 128
    %354 = vxpose.xlu0.b32.cont [12/16] 0.0, 128
    %355 = vxpose.xlu0.b32.cont [13/16] 0.0, 128
    %356 = vxpose.xlu0.b32.cont [14/16] 0.0, 128
    %357 = vxpose.xlu0.b32.cont [15/16] 0.0, 128
    %358 = vxpose.xlu0.b32.end [16/16] 0.0, 128
    %v359 = vpop.trf.xlu0
    %v360 = vpop.trf.xlu0
    %v361 = vpop.trf.xlu0
    %v362 = vpop.trf.xlu0
    %v363 = vpop.trf.xlu0
    %v364 = vpop.trf.xlu0
    %v365 = vpop.trf.xlu0
    %v366 = vpop.trf.xlu0
    %v367 = vpop.trf.xlu0
    %v368 = vpop.trf.xlu0
    %v369 = vpop.trf.xlu0
    %v370 = vpop.trf.xlu0
    %v371 = vpop.trf.xlu0
    %v372 = vpop.trf.xlu0
    %v373 = vpop.trf.xlu0
    %v374 = vpop.trf.xlu0
    %vm375 = vcmask 58368
    %376 = vst.msk [vmem:[#allocation10] sm:$0x3] %vm375, %v359
    // Predicated region
    $region46: #{tpu_custom_call.1} parent=1 // pred_check
      _
    $region47: #{tpu_custom_call.1} parent=1 // pred_check_branch
      %378 = sbr.rel (0) target = $region49
    $region48: #{tpu_custom_call.1} parent=1 // pred_region
      %s380 = ssub.s32 32, 32
      %381 = vsyncadd [#allocation4], %s380
      %s383 = sshll.u32 [#allocation10], 4
      %s384 = int_to_ptr.vmem [resolvable:$true] %s383
      %386 = dma.vmem_to_hbm [thread:$0]  %s384, 32, %s7, [#allocation4]
    $region49: #{tpu_custom_call.1} parent=1 // pred_fallthru
      _
    // Predicated region
    $region50: #{tpu_custom_call.1} parent=1 // pred_check
      _
    $region51: #{tpu_custom_call.1} parent=1 // pred_check_branch
      %388 = sbr.rel (0) target = $region53
    $region52: #{tpu_custom_call.1} parent=1 // pred_region
      %389 = dma.done [#allocation4], 32
    $region53: #{tpu_custom_call.1} parent=1 // pred_fallthru
      _
    %390 = vsyncpa [#allocation3], 1
    %391 = vsyncpa [#allocation6], 1
    %392 = vsyncpa [#allocation9], 1
    %393 = vsyncpa [#allocation4], 1

</llo_original>
